<compile_context>
chip_gen: v6e
topology: v6e:2x2x1
jax: 0.10.0
libtpu: 0.0.40
codegen_flags: <defaults>
</compile_context>

<pallas_src>
import jax
import jax.numpy as jnp
from jax.experimental import pallas as pl
from jax.experimental.pallas import tpu as pltpu

BN_EPS = 1e-5

# Cast MXU operands to bf16 (f32 accumulation + f32 BN/SiLU epilogue).
USE_BF16_MXU = True


def _tpu_vmem_capacity_bytes():
    try:
        info = pltpu.get_tpu_info()
        cap = getattr(info, "vmem_capacity_bytes", None)
        if cap:
            return int(cap)
    except Exception:
        pass
    return 64 * 1024 * 1024  # v7x per-TensorCore VMEM (most conservative)


_VMEM_CAPACITY = _tpu_vmem_capacity_bytes()
# Scoped-VMEM limit: ~3/4 of physical, capped well below the 128 MiB parts.
VMEM_LIMIT_BYTES = min(_VMEM_CAPACITY * 3 // 4, 96 * 1024 * 1024)
# Bigger HW tiles on 128 MiB parts (v5e/v6e); conservative on v7x (64 MiB).
TILE_HW = 2048 if _VMEM_CAPACITY >= 96 * 1024 * 1024 else 1024


def _compiler_params(dims):
    return pltpu.CompilerParams(dimension_semantics=dims,
                                vmem_limit_bytes=VMEM_LIMIT_BYTES)


def _bn_silu(acc, s_ref, b_ref):
    """Folded BatchNorm + SiLU epilogue in f32 (per-row scale/bias)."""
    y = acc * s_ref[...] + b_ref[...]
    return y * jax.nn.sigmoid(y)


# ----------------------------------------------------------------------------
# cv1: 1x1 Conv + BN + SiLU.  Channel-major in (NCHW flattened to (Cin, HW)),
# channel-major out; chunk(2, dim=channel) is fused as two separate dots.
# ----------------------------------------------------------------------------
def _make_cv1_kernel(use_bf16):
    def kernel(x_ref, w0_ref, w1_ref, s0_ref, b0_ref, s1_ref, b1_ref,
               o0_ref, o1_ref):
        x = x_ref[0]                                           # (Cin, TM)
        if use_bf16:
            x = x.astype(jnp.bfloat16)
        for w_r, s_r, b_r, o_r in ((w0_ref, s0_ref, b0_ref, o0_ref),
                                   (w1_ref, s1_ref, b1_ref, o1_ref)):
            # (c_half, Cin) @ (Cin, TM) -> (c_half, TM): standard orientation,
            # HW tile is the lane-dense output dim.
            y = jnp.dot(w_r[...], x, preferred_element_type=jnp.float32)
            o_r[0] = _bn_silu(y, s_r, b_r).astype(o_r.dtype)
    return kernel


def conv1x1_cv1(x_nchw, w, scale, bias, c_half, tile_hw=TILE_HW):
    n, cin, h, wd = x_nchw.shape
    hw = h * wd
    cout = w.shape[-1]
    assert cout == 2 * c_half
    x3 = x_nchw.reshape(n, cin, hw)                            # free reshape
    wdt = jnp.bfloat16 if USE_BF16_MXU else jnp.float32
    wt = jnp.transpose(w.reshape(cin, cout)).astype(wdt)       # (Cout, Cin)
    w0, w1 = wt[:c_half], wt[c_half:]                          # row-split halves
    tm = min(hw, tile_hw)
    grid = (n, pl.cdiv(hw, tm))
    out_shape = (jax.ShapeDtypeStruct((n, c_half, hw), x_nchw.dtype),
                 jax.ShapeDtypeStruct((n, c_half, hw), x_nchw.dtype))
    y0, y1 = pl.pallas_call(
        _make_cv1_kernel(USE_BF16_MXU),
        out_shape=out_shape,
        grid=grid,
        in_specs=[
            pl.BlockSpec((1, cin, tm), lambda i, j: (i, 0, j)),
            pl.BlockSpec((c_half, cin), lambda i, j: (0, 0)),  # resident weights
            pl.BlockSpec((c_half, cin), lambda i, j: (0, 0)),
            pl.BlockSpec((c_half, 1), lambda i, j: (0, 0)),
            pl.BlockSpec((c_half, 1), lambda i, j: (0, 0)),
            pl.BlockSpec((c_half, 1), lambda i, j: (0, 0)),
            pl.BlockSpec((c_half, 1), lambda i, j: (0, 0)),
        ],
        out_specs=(pl.BlockSpec((1, c_half, tm), lambda i, j: (i, 0, j)),
                   pl.BlockSpec((1, c_half, tm), lambda i, j: (i, 0, j))),
        compiler_params=_compiler_params(("parallel", "parallel")),
    )(x3, w0, w1,
      scale[:c_half].reshape(c_half, 1), bias[:c_half].reshape(c_half, 1),
      scale[c_half:].reshape(c_half, 1), bias[c_half:].reshape(c_half, 1))
    return y0, y1                                              # 2 x (N, c, HW)


# ----------------------------------------------------------------------------
# Bottleneck(c, c, shortcut=False, k=((3,3),(3,3)), e=1.0): two fused 3x3
# Conv+BN+SiLU, channel-major, row-band tiled with manual double-buffered DMA.
# ----------------------------------------------------------------------------
def _conv3x3_bn_silu(window, w_ref, s_ref, b_ref, oh, ow, cin, use_bf16):
    """One 3x3 conv + folded BN + SiLU over a channel-major padded window.

    window(ky, kx) -> (cin, oh, ow) input slab shifted by (ky, kx).
    w_ref is (3, cout, 3*cin) with columns ordered (kx, ci).
    Returns the (cout, oh*ow) f32 activation.  Three accumulating K=3c dots
    (one per kernel row) -- no (H*W, 9c) im2col slab is ever materialized.
    """
    acc = None
    for ky in range(3):
        p = jnp.concatenate(
            [window(ky, kx).reshape(cin, oh * ow) for kx in range(3)], axis=0)
        if use_bf16:
            p = p.astype(jnp.bfloat16)
        d = jnp.dot(w_ref[ky], p, preferred_element_type=jnp.float32)
        acc = d if acc is None else acc + d
    return _bn_silu(acc, s_ref, b_ref)


def _make_bottleneck_kernel(bh, h, w, c, nb, use_bf16):
    oh = bh + 2  # intermediate rows carried per band (1-row halo each side)

    def kernel(xpad_hbm, w1_ref, s1_ref, b1_ref, w2_ref, s2_ref, b2_ref,
               o_ref, xp_ref, tp_ref, sem):
        i = pl.program_id(0)
        j = pl.program_id(1)

        def fetch(img, band, slot):
            start = band * bh
            if bh % 8 == 0:
                start = pl.multiple_of(start, 8)
            pltpu.make_async_copy(
                xpad_hbm.at[img, :, pl.ds(start, bh + 4), :],
                xp_ref.at[slot], sem.at[slot]).start()

        # First band of every image fetches its own data (correct under any
        # megacore split of the parallel batch axis); later bands were
        # prefetched by the previous band of the same image.
        @pl.when(j == 0)
        def _():
            fetch(i, 0, 0)

        @pl.when(j + 1 < nb)
        def _():
            fetch(i, j + 1, (j + 1) % 2)

        slot = j % 2
        pltpu.make_async_copy(
            xpad_hbm.at[i, :, pl.ds(0, bh + 4), :],
            xp_ref.at[slot], sem.at[slot]).wait()

        # First 3x3 Conv+BN+SiLU over bh+2 output rows (the extra top/bottom
        # rows are the recomputed halo the fused second conv needs).
        t = _conv3x3_bn_silu(
            lambda ky, kx: xp_ref[slot, :, ky:ky + oh, kx:kx + w],
            w1_ref, s1_ref, b1_ref, oh, w, c, use_bf16)        # (c, oh*w) f32

        # Stage the intermediate in a zero-padded-W VMEM scratch; only the two
        # border columns are (re)zeroed, never the whole buffer.
        tp_ref[:, :, 1:w + 1] = t.reshape(c, oh, w).astype(tp_ref.dtype)
        zcol = jnp.zeros((c, oh, 1), tp_ref.dtype)
        tp_ref[:, :, 0:1] = zcol
        tp_ref[:, :, w + 1:w + 2] = zcol

        # Halo rows that fall outside the image must be conv2's zero padding,
        # not conv1 applied to out-of-image positions.
        @pl.when(j == 0)
        def _():
            tp_ref[:, 0:1, :] = jnp.zeros((c, 1, w + 2), tp_ref.dtype)

        @pl.when(j == nb - 1)
        def _():
            tp_ref[:, oh - 1:oh, :] = jnp.zeros((c, 1, w + 2), tp_ref.dtype)

        # Second 3x3 Conv+BN+SiLU; the intermediate never left VMEM.
        y = _conv3x3_bn_silu(
            lambda ky, kx: tp_ref[:, ky:ky + bh, kx:kx + w],
            w2_ref, s2_ref, b2_ref, bh, w, c, use_bf16)        # (c, bh*w) f32

        o_ref[0] = y.reshape(c, bh, w).astype(o_ref.dtype)

    return kernel


def _pick_band_h(h, w, c, itemsize):
    """Largest band height (multiple of 8 dividing H, or H itself) whose
    padded channel-major input band stays around ~1 MiB."""
    row_bytes = max((w + 2) * c * itemsize, 1)
    target_rows = max(8, (1024 * 1024) // row_bytes)
    if target_rows >= h:
        return h
    bh = max(8, (target_rows // 8) * 8)
    while bh > 8 and h % bh:
        bh -= 8
    return bh if h % bh == 0 else h


def bottleneck_3x3x2(x, p1, p2, band_h=None):
    """Fused Bottleneck(c, c, shortcut=False, k=((3,3),(3,3)), e=1.0), NCHW."""
    n, c, h, w = x.shape
    (w1, s1, b1), (w2, s2, b2) = p1, p2
    if band_h is None:
        band_h = _pick_band_h(h, w, c, jnp.dtype(x.dtype).itemsize)
    bh = min(int(band_h), h)
    if h % bh != 0 or (bh != h and bh % 8 != 0):
        bh = h                                     # fall back to whole-image bands
    nb = h // bh

    wdt = jnp.bfloat16 if USE_BF16_MXU else jnp.float32
    # (ky,kx,ci,co) -> (ky, co, kx*ci): per-kernel-row weight slabs whose
    # column order matches the (kx, ci) patch concatenation in the kernel.
    wf1 = jnp.transpose(w1, (0, 3, 1, 2)).reshape(3, c, 3 * c).astype(wdt)
    wf2 = jnp.transpose(w2, (0, 3, 1, 2)).reshape(3, c, 3 * c).astype(wdt)

    # Zero-pad once in HBM (2-row / 1-col halo): every band is then a simple
    # contiguous row window for the manual DMA.
    x_pad = jnp.pad(x, ((0, 0), (0, 0), (2, 2), (1, 1)))

    kernel = _make_bottleneck_kernel(bh, h, w, c, nb, USE_BF16_MXU)
    return pl.pallas_call(
        kernel,
        out_shape=jax.ShapeDtypeStruct((n, c, h, w), x.dtype),
        grid=(n, nb),
        in_specs=[
            pl.BlockSpec(memory_space=pl.ANY),                     # padded input (HBM)
            pl.BlockSpec((3, c, 3 * c), lambda i, j: (0, 0, 0)),   # resident weights
            pl.BlockSpec((c, 1), lambda i, j: (0, 0)),
            pl.BlockSpec((c, 1), lambda i, j: (0, 0)),
            pl.BlockSpec((3, c, 3 * c), lambda i, j: (0, 0, 0)),
            pl.BlockSpec((c, 1), lambda i, j: (0, 0)),
            pl.BlockSpec((c, 1), lambda i, j: (0, 0)),
        ],
        out_specs=pl.BlockSpec((1, c, bh, w), lambda i, j: (i, 0, j, 0)),
        scratch_shapes=[
            pltpu.VMEM((2, c, bh + 4, w + 2), x.dtype),            # band double buffer
            pltpu.VMEM((c, bh + 2, w + 2), jnp.float32),           # padded intermediate
            pltpu.SemaphoreType.DMA((2,)),
        ],
        compiler_params=_compiler_params(("parallel", "arbitrary")),
    )(x_pad, wf1, s1.reshape(c, 1), b1.reshape(c, 1),
      wf2, s2.reshape(c, 1), b2.reshape(c, 1))


# ----------------------------------------------------------------------------
# cv2: 1x1 Conv + BN + SiLU with the channel-concat fused as per-chunk
# accumulating dots; channel-major in and out (output is NCHW directly).
# ----------------------------------------------------------------------------
def _make_cv2_kernel(n_chunks, use_bf16):
    def kernel(*refs):
        x_refs = refs[:n_chunks]
        w_refs = refs[n_chunks:2 * n_chunks]
        s_ref, b_ref, o_ref = refs[2 * n_chunks:2 * n_chunks + 3]
        # concat(ys, channel) @ W  ==  sum_j W_j @ ys_j  (channel-major):
        # per-chunk accumulating dots, no concat tensor anywhere.
        acc = None
        for x_r, w_r in zip(x_refs, w_refs):
            x = x_r[0]                                         # (c, TM)
            if use_bf16:
                x = x.astype(jnp.bfloat16)
            d = jnp.dot(w_r[...], x, preferred_element_type=jnp.float32)
            acc = d if acc is None else acc + d
        o_ref[0] = _bn_silu(acc, s_ref, b_ref).astype(o_ref.dtype)
    return kernel


def conv1x1_cv2(chunks, w, scale, bias, tile_hw=TILE_HW):
    n, c, hw = chunks[0].shape
    k = len(chunks)
    cout = w.shape[-1]
    wdt = jnp.bfloat16 if USE_BF16_MXU else jnp.float32
    wt = jnp.transpose(w.reshape(k * c, cout)).astype(wdt)     # (Cout, k*c)
    w_chunks = [wt[:, jj * c:(jj + 1) * c] for jj in range(k)]
    tm = min(hw, tile_hw)
    grid = (n, pl.cdiv(hw, tm))
    in_specs = (
        [pl.BlockSpec((1, c, tm), lambda i, j: (i, 0, j)) for _ in range(k)]
        + [pl.BlockSpec((cout, c), lambda i, j: (0, 0)) for _ in range(k)]
        + [pl.BlockSpec((cout, 1), lambda i, j: (0, 0)),
           pl.BlockSpec((cout, 1), lambda i, j: (0, 0))])
    return pl.pallas_call(
        _make_cv2_kernel(k, USE_BF16_MXU),
        out_shape=jax.ShapeDtypeStruct((n, cout, hw), chunks[0].dtype),
        grid=grid,
        in_specs=in_specs,
        out_specs=pl.BlockSpec((1, cout, tm), lambda i, j: (i, 0, j)),
        compiler_params=_compiler_params(("parallel", "parallel")),
    )(*chunks, *w_chunks, scale.reshape(cout, 1), bias.reshape(cout, 1))


# ----------------------------------------------------------------------------
# Parameter construction (deterministic, synthetic)
# ----------------------------------------------------------------------------
def init_conv_params(key, cin, cout, k):
    """Conv2d weight (k,k,cin,cout) HWIO + folded BatchNorm (scale, bias)."""
    k1, k2, k3, k4, k5 = jax.random.split(key, 5)
    w = jax.random.normal(k1, (k, k, cin, cout), jnp.float32) * 0.1
    gamma = jax.random.uniform(k2, (cout,), jnp.float32, 0.5, 1.5)
    beta = jax.random.normal(k3, (cout,), jnp.float32) * 0.1
    mean = jax.random.normal(k4, (cout,), jnp.float32) * 0.1
    var = jax.random.uniform(k5, (cout,), jnp.float32, 0.5, 1.5)
    scale = gamma / jnp.sqrt(var + BN_EPS)
    bias = beta - mean * scale
    return w, scale, bias


def init_c2f_params(key, c1, c2, n=1, e=0.5):
    c = int(c2 * e)
    keys = jax.random.split(key, 2 + 2 * n)
    params = {
        "c": c,
        "n": n,
        "cv1": init_conv_params(keys[0], c1, 2 * c, 1),
        "cv2": init_conv_params(keys[1], (2 + n) * c, c2, 1),
        "m": [],
    }
    for i in range(n):
        b_cv1 = init_conv_params(keys[2 + 2 * i], c, c, 3)
        b_cv2 = init_conv_params(keys[3 + 2 * i], c, c, 3)
        params["m"].append((b_cv1, b_cv2))
    return params


# ----------------------------------------------------------------------------
# C2f forward (shortcut=False -> Bottleneck has no residual add)
# ----------------------------------------------------------------------------
def c2f_forward(x_nchw, params, band_h=None):
    c = params["c"]
    n, _, h, wd = x_nchw.shape
    hw = h * wd
    y0, y1 = conv1x1_cv1(x_nchw, *params["cv1"], c_half=c)     # 2 x (N, c, HW)
    ys = [y0, y1]
    cur = y1.reshape(n, c, h, wd)                              # free reshape
    for p1, p2 in params["m"]:
        cur = bottleneck_3x3x2(cur, p1, p2, band_h=band_h)     # (N, c, H, W)
        ys.append(cur.reshape(n, c, hw))                       # free reshape
    out = conv1x1_cv2(ys, *params["cv2"])                      # (N, C2, HW)
    return out.reshape(n, -1, h, wd)                           # NCHW


# ----------------------------------------------------------------------------
# Pure-JAX reference (f32) for the correctness check
# ----------------------------------------------------------------------------
def _ref_conv(x_nhwc, w, scale, bias, pad):
    y = jax.lax.conv_general_dilated(
        x_nhwc, w, window_strides=(1, 1), padding=[(pad, pad), (pad, pad)],
        dimension_numbers=("NHWC", "HWIO", "NHWC"))
    y = y * scale + bias
    return y * jax.nn.sigmoid(y)


def c2f_reference(x_nchw, params):
    c = params["c"]
    x = jnp.transpose(x_nchw, (0, 2, 3, 1))
    y = _ref_conv(x, *params["cv1"], pad=0)
    ys = [y[..., :c], y[..., c:]]
    for (b_cv1, b_cv2) in params["m"]:
        t = _ref_conv(ys[-1], *b_cv1, pad=1)
        ys.append(_ref_conv(t, *b_cv2, pad=1))
    cat = jnp.concatenate(ys, axis=-1)
    out = _ref_conv(cat, *params["cv2"], pad=0)
    return jnp.transpose(out, (0, 3, 1, 2))


if __name__ == "__main__":
    key = jax.random.PRNGKey(0)
    kx, kp = jax.random.split(key)

    # C2f(c1=4, c2=4, n=1, shortcut=False, e=0.5) -> hidden c = 2
    B, C1, C2, H, W = 2, 4, 4, 16, 16
    x = jax.random.normal(kx, (B, C1, H, W), jnp.float32)
    params = init_c2f_params(kp, C1, C2, n=1, e=0.5)

    # band_h=8 exercises the multi-band halo-recompute + prefetch path
    # (2 bands of 8 rows per image).
    out = jax.block_until_ready(c2f_forward(x, params, band_h=8))
    assert out.shape == (B, C2, H, W), out.shape

    ref = jax.block_until_ready(c2f_reference(x, params))
    err = float(jnp.max(jnp.abs(out - ref)))
    # bf16 MXU operands with f32 accumulation: relaxed parity tolerance.
    assert jnp.allclose(out, ref, atol=2e-2, rtol=2e-2), err

    print("KERNEL_OK")
</pallas_src>

<mosaic_0001>
module attributes {stable_mosaic.version = 11 : i64} {
  func.func @kernel(%arg0: i32, %arg1: i32, %arg2: memref<1x4x256xf32, #tpu.memory_space<vmem>>, %arg3: memref<2x4xbf16, #tpu.memory_space<vmem>>, %arg4: memref<2x4xbf16, #tpu.memory_space<vmem>>, %arg5: memref<2x1xf32, #tpu.memory_space<vmem>>, %arg6: memref<2x1xf32, #tpu.memory_space<vmem>>, %arg7: memref<2x1xf32, #tpu.memory_space<vmem>>, %arg8: memref<2x1xf32, #tpu.memory_space<vmem>>, %arg9: memref<1x2x256xf32, #tpu.memory_space<vmem>>, %arg10: memref<1x2x256xf32, #tpu.memory_space<vmem>>) attributes {dimension_semantics = [#tpu.dimension_semantics<parallel>, #tpu.dimension_semantics<parallel>], iteration_bounds = array<i64: 2, 1>, scalar_prefetch = 0 : i64, scratch_operands = 0 : i64, tpu.core_type = #tpu.core_type<tc>, window_params = [{transform_indices = @transform_0, window_bounds = array<i64: 1, 4, 256>}, {pipeline_mode = #tpu.pipeline_mode<synchronous>, transform_indices = @transform_1, window_bounds = array<i64: 2, 4>}, {pipeline_mode = #tpu.pipeline_mode<synchronous>, transform_indices = @transform_2, window_bounds = array<i64: 2, 4>}, {pipeline_mode = #tpu.pipeline_mode<synchronous>, transform_indices = @transform_3, window_bounds = array<i64: 2, 1>}, {pipeline_mode = #tpu.pipeline_mode<synchronous>, transform_indices = @transform_4, window_bounds = array<i64: 2, 1>}, {pipeline_mode = #tpu.pipeline_mode<synchronous>, transform_indices = @transform_5, window_bounds = array<i64: 2, 1>}, {pipeline_mode = #tpu.pipeline_mode<synchronous>, transform_indices = @transform_6, window_bounds = array<i64: 2, 1>}, {transform_indices = @transform_7, window_bounds = array<i64: 1, 2, 256>}, {transform_indices = @transform_8, window_bounds = array<i64: 1, 2, 256>}]} {
    %c0 = arith.constant 0 : index
    %c0_0 = arith.constant 0 : index
    %c0_1 = arith.constant 0 : index
    %0 = vector.load %arg2[%c0, %c0_0, %c0_1] : memref<1x4x256xf32, #tpu.memory_space<vmem>>, vector<1x4x256xf32>
    %1 = vector.shape_cast %0 : vector<1x4x256xf32> to vector<4x256xf32>
    %2 = arith.truncf %1 : vector<4x256xf32> to vector<4x256xbf16>
    %c0_2 = arith.constant 0 : index
    %c0_3 = arith.constant 0 : index
    %3 = vector.load %arg3[%c0_2, %c0_3] : memref<2x4xbf16, #tpu.memory_space<vmem>>, vector<2x4xbf16>
    %cst = arith.constant dense<0.000000e+00> : vector<2x256xf32>
    %4 = tpu.matmul %3, %2, %cst {dimension_numbers = #tpu.dot_dimension_numbers<[1], [0], [0], [1], [0, 0, 1, 1], [], []>} : vector<2x4xbf16>, vector<4x256xbf16>, vector<2x256xf32> -> vector<2x256xf32>
    %c0_4 = arith.constant 0 : index
    %c0_5 = arith.constant 0 : index
    %5 = vector.load %arg5[%c0_4, %c0_5] : memref<2x1xf32, #tpu.memory_space<vmem>>, vector<2x1xf32>
    %6 = vector.broadcast %5 : vector<2x1xf32> to vector<2x256xf32>
    %7 = arith.mulf %4, %6 : vector<2x256xf32>
    %c0_6 = arith.constant 0 : index
    %c0_7 = arith.constant 0 : index
    %8 = vector.load %arg6[%c0_6, %c0_7] : memref<2x1xf32, #tpu.memory_space<vmem>>, vector<2x1xf32>
    %9 = vector.broadcast %8 : vector<2x1xf32> to vector<2x256xf32>
    %10 = arith.addf %7, %9 : vector<2x256xf32>
    %11 = arith.negf %10 : vector<2x256xf32>
    %12 = math.exp %11 : vector<2x256xf32>
    %cst_8 = arith.constant 1.000000e+00 : f32
    %13 = vector.broadcast %cst_8 : f32 to vector<2x256xf32>
    %14 = arith.addf %13, %12 : vector<2x256xf32>
    %15 = arith.divf %13, %14 : vector<2x256xf32>
    %16 = arith.mulf %10, %15 : vector<2x256xf32>
    %c0_9 = arith.constant 0 : index
    %c0_10 = arith.constant 0 : index
    %c0_11 = arith.constant 0 : index
    %17 = vector.load %arg9[%c0_9, %c0_10, %c0_11] : memref<1x2x256xf32, #tpu.memory_space<vmem>>, vector<1x2x256xf32>
    %18 = vector.shape_cast %17 : vector<1x2x256xf32> to vector<2x256xf32>
    %19 = vector.shape_cast %16 : vector<2x256xf32> to vector<1x2x256xf32>
    tpu.vector_store %arg9[%c0_9, %c0_10, %c0_11], %19 {strides = array<i32>} : memref<1x2x256xf32, #tpu.memory_space<vmem>>, vector<1x2x256xf32>,
    %c0_12 = arith.constant 0 : index
    %c0_13 = arith.constant 0 : index
    %20 = vector.load %arg4[%c0_12, %c0_13] : memref<2x4xbf16, #tpu.memory_space<vmem>>, vector<2x4xbf16>
    %cst_14 = arith.constant dense<0.000000e+00> : vector<2x256xf32>
    %21 = tpu.matmul %20, %2, %cst_14 {dimension_numbers = #tpu.dot_dimension_numbers<[1], [0], [0], [1], [0, 0, 1, 1], [], []>} : vector<2x4xbf16>, vector<4x256xbf16>, vector<2x256xf32> -> vector<2x256xf32>
    %c0_15 = arith.constant 0 : index
    %c0_16 = arith.constant 0 : index
    %22 = vector.load %arg7[%c0_15, %c0_16] : memref<2x1xf32, #tpu.memory_space<vmem>>, vector<2x1xf32>
    %23 = vector.broadcast %22 : vector<2x1xf32> to vector<2x256xf32>
    %24 = arith.mulf %21, %23 : vector<2x256xf32>
    %c0_17 = arith.constant 0 : index
    %c0_18 = arith.constant 0 : index
    %25 = vector.load %arg8[%c0_17, %c0_18] : memref<2x1xf32, #tpu.memory_space<vmem>>, vector<2x1xf32>
    %26 = vector.broadcast %25 : vector<2x1xf32> to vector<2x256xf32>
    %27 = arith.addf %24, %26 : vector<2x256xf32>
    %28 = arith.negf %27 : vector<2x256xf32>
    %29 = math.exp %28 : vector<2x256xf32>
    %cst_19 = arith.constant 1.000000e+00 : f32
    %30 = vector.broadcast %cst_19 : f32 to vector<2x256xf32>
    %31 = arith.addf %30, %29 : vector<2x256xf32>
    %32 = arith.divf %30, %31 : vector<2x256xf32>
    %33 = arith.mulf %27, %32 : vector<2x256xf32>
    %c0_20 = arith.constant 0 : index
    %c0_21 = arith.constant 0 : index
    %c0_22 = arith.constant 0 : index
    %34 = vector.load %arg10[%c0_20, %c0_21, %c0_22] : memref<1x2x256xf32, #tpu.memory_space<vmem>>, vector<1x2x256xf32>
    %35 = vector.shape_cast %34 : vector<1x2x256xf32> to vector<2x256xf32>
    %36 = vector.shape_cast %33 : vector<2x256xf32> to vector<1x2x256xf32>
    tpu.vector_store %arg10[%c0_20, %c0_21, %c0_22], %36 {strides = array<i32>} : memref<1x2x256xf32, #tpu.memory_space<vmem>>, vector<1x2x256xf32>,
    return
  }
  func.func @transform_0(%arg0: i32, %arg1: i32) -> (i32, i32, i32) {
    %c0_i32 = arith.constant 0 : i32
    %c0_i32_0 = arith.constant 0 : i32
    return %arg0, %c0_i32, %arg1 : i32, i32, i32
  }
  func.func @transform_1(%arg0: i32, %arg1: i32) -> (i32, i32) {
    %c0_i32 = arith.constant 0 : i32
    %c0_i32_0 = arith.constant 0 : i32
    %c0_i32_1 = arith.constant 0 : i32
    return %c0_i32, %c0_i32_0 : i32, i32
  }
  func.func @transform_2(%arg0: i32, %arg1: i32) -> (i32, i32) {
    %c0_i32 = arith.constant 0 : i32
    %c0_i32_0 = arith.constant 0 : i32
    %c0_i32_1 = arith.constant 0 : i32
    return %c0_i32, %c0_i32_0 : i32, i32
  }
  func.func @transform_3(%arg0: i32, %arg1: i32) -> (i32, i32) {
    %c0_i32 = arith.constant 0 : i32
    %c0_i32_0 = arith.constant 0 : i32
    %c0_i32_1 = arith.constant 0 : i32
    return %c0_i32, %c0_i32_0 : i32, i32
  }
  func.func @transform_4(%arg0: i32, %arg1: i32) -> (i32, i32) {
    %c0_i32 = arith.constant 0 : i32
    %c0_i32_0 = arith.constant 0 : i32
    %c0_i32_1 = arith.constant 0 : i32
    return %c0_i32, %c0_i32_0 : i32, i32
  }
  func.func @transform_5(%arg0: i32, %arg1: i32) -> (i32, i32) {
    %c0_i32 = arith.constant 0 : i32
    %c0_i32_0 = arith.constant 0 : i32
    %c0_i32_1 = arith.constant 0 : i32
    return %c0_i32, %c0_i32_0 : i32, i32
  }
  func.func @transform_6(%arg0: i32, %arg1: i32) -> (i32, i32) {
    %c0_i32 = arith.constant 0 : i32
    %c0_i32_0 = arith.constant 0 : i32
    %c0_i32_1 = arith.constant 0 : i32
    return %c0_i32, %c0_i32_0 : i32, i32
  }
  func.func @transform_7(%arg0: i32, %arg1: i32) -> (i32, i32, i32) {
    %c0_i32 = arith.constant 0 : i32
    %c0_i32_0 = arith.constant 0 : i32
    return %arg0, %c0_i32, %arg1 : i32, i32, i32
  }
  func.func @transform_8(%arg0: i32, %arg1: i32) -> (i32, i32, i32) {
    %c0_i32 = arith.constant 0 : i32
    %c0_i32_0 = arith.constant 0 : i32
    return %arg0, %c0_i32, %arg1 : i32, i32, i32
  }
}

</mosaic_0001>

<llo_original>
// kernel: tpu_custom_call.1
$region0: #{tpu_custom_call.1}
  #allocation0 [shape = 'u32[]', space=smem, size = 0x4, offset = 0x4, fixed_abs, tag = 'smem constant byte address 0x4 - core index']
  #allocation1 [shape = 'u32[144,128]{1,0:T(1,128)}', space=vmem, size = 0x12000, scoped, tag = 'internal scratch']
  %s0 = inlined_call_operand.hbm [shape: f32[2,4,256], index: 0, kind: input, shape index: {}]
  %s1 = inlined_call_operand.vmem [shape: bf16[2,4], index: 1, kind: input, shape index: {}]
  %s2 = inlined_call_operand.vmem [shape: bf16[2,4], index: 2, kind: input, shape index: {}]
  %s3 = inlined_call_operand.vmem [shape: f32[2,1], index: 3, kind: input, shape index: {}]
  %s4 = inlined_call_operand.vmem [shape: f32[2,1], index: 4, kind: input, shape index: {}]
  %s5 = inlined_call_operand.vmem [shape: f32[2,1], index: 5, kind: input, shape index: {}]
  %s6 = inlined_call_operand.vmem [shape: f32[2,1], index: 6, kind: input, shape index: {}]
  %s7 = inlined_call_operand.hbm [shape: f32[2,2,256], index: 7, kind: output, shape index: {0}]
  %s8 = inlined_call_operand.hbm [shape: f32[2,2,256], index: 8, kind: output, shape index: {1}]
  %9 = xla_tuple %s7, %s8
  %s10 = sld [smem:[#allocation0]]
  $region73: #{tpu_custom_call.1} parent=0
    _
  %s12 = ssub.s32 1, %s10
  %s13 = scalar_select 0, %s12, %s10
  $region1: #{tpu_custom_call.1} parent=0
    #allocation2 [shape = 'u8[8192]{0}', space=vmem, size = 0x2000, scoped, tag = 'input window, operand 0']
    #allocation3 [shape = 's32[2]{0}', space=sflag, size = 0x8, scoped, tag = 'scoped memory for tpu_custom_call.1']
    #allocation4 [shape = 's32[2]{0}', space=sflag, size = 0x8, scoped, tag = 'scoped memory for tpu_custom_call.1']
    #allocation5 [shape = 'u8[4096]{0}', space=vmem, size = 0x1000, scoped, tag = 'output window, operand 0']
    #allocation6 [shape = 'u8[4096]{0}', space=vmem, size = 0x1000, scoped, tag = 'output window, operand 1']
    #allocation7 [shape = 's32[2]{0}', space=sflag, size = 0x8, scoped, tag = 'scoped memory for tpu_custom_call.1']
    %14 = vsyncpa [#allocation3], 0
    %s15 = scalar_lea.sflag [#allocation3], 1
    %16 = vsyncpa %s15, 0
    %17 = vsyncpa [#allocation4], 0
    %s18 = scalar_lea.sflag [#allocation4], 1
    %19 = vsyncpa %s18, 0
    %20 = vsyncpa [#allocation7], 0
    %s21 = scalar_lea.sflag [#allocation7], 1
    %22 = vsyncpa %s21, 0
    loop: start=0, step=1, limit=4
    $region2: #{tpu_custom_call.1} parent=1 // loop_pre_header
      _
    $region3: #{tpu_custom_call.1} parent=1 // loop_header
      %s24 = sphi 0, %s28
      %p25 = scmp.ge.s32.totalorder %s24, 4
      %s31 = sphi 0, %s43
      %s32 = sphi 0, %s39
      %s33 = sphi 0, %s31
      %s34 = sphi 0, %s32
      %s35 = sphi 0, %s33
      %s36 = sphi 0, %s34
      %s48 = sphi 0, %s50
      %s51 = sphi 0, %s48
      %s52 = sphi 0, %s51
      %s68 = sphi 0, %s52
      %s72 = sphi 0, %s72
      %s74 = sphi 0, %s72
      %s75 = sphi 0, %s74
      %s89 = sphi 0, %s75
      %s93 = sphi 0, %s93
      %s95 = sphi 0, %s93
      %s96 = sphi 0, %s95
      %s110 = sphi 0, %s96
      %s114 = sphi 0, %s114
      %s116 = sphi 0, %s114
      %s117 = sphi 0, %s116
      %s131 = sphi 0, %s117
      %s135 = sphi 0, %s135
      %s137 = sphi 0, %s135
      %s138 = sphi 0, %s137
      %s152 = sphi 0, %s138
      %s156 = sphi 0, %s156
      %s158 = sphi 0, %s156
      %s159 = sphi 0, %s158
      %s173 = sphi 0, %s159
      %s177 = sphi 0, %s177
      %s179 = sphi 0, %s177
      %s180 = sphi 0, %s179
      %s194 = sphi 0, %s180
      %s202 = sphi 0, %s204
      %s205 = sphi 0, %s202
      %s206 = sphi 0, %s205
      %s222 = sphi 0, %s206
      %s230 = sphi 0, %s232
      %s233 = sphi 0, %s230
      %s234 = sphi 0, %s233
      %s250 = sphi 0, %s234
    $region4: #{tpu_custom_call.1} parent=1 // loop_header_branch
      %27 = sbr.rel (%p25) target = $region8
    $region5: #{tpu_custom_call.1} parent=1 // loop_body
      %s29 = ssub.s32 %s24, 1
      %s30 = ssub.s32 %s24, 2
      %s37 = sadd.s32 1, %s32
      %p38 = scmp.ge.s32.totalorder %s37, 1
      %s39 = scalar_select %p38, 0, %s37
      %s40 = sadd.s32 1, %s31
      %s41 = scalar_select %p38, %s40, %s31
      %p42 = scmp.ge.s32.totalorder %s41, 2
      %s43 = scalar_select %p42, 0, %s41
      %s44 = ssub.s32 %s31, %s43
      %s45 = ssub.s32 %s32, %s39
      %s46 = sor.u32 %s44, %s45
      %p47 = scmp.eq.s32.totalorder %s46, 0
      %s49 = sadd.s32 %s48, 1
      %s50 = scalar_select %p47, %s48, %s49
      %p53 = pneg %p47
      %p54 = scmp.eq.s32.totalorder %s24, 1
      %p55 = por %p53, %p54
      %p56 = scmp.ne.s32.totalorder %s48, %s51
      %p57 = scmp.eq.s32.totalorder %s24, 0
      %p58 = por %p56, %p57
      %p59 = scmp.ne.s32.totalorder %s48, %s51
      %p60 = scmp.eq.s32.totalorder %s29, 1
      %p61 = por %p59, %p60
      %p62 = scmp.ne.s32.totalorder %s51, %s52
      %p63 = scmp.eq.s32.totalorder %s29, 0
      %p64 = por %p62, %p63
      %p65 = scmp.ne.s32.totalorder %s51, %s52
      %p66 = scmp.eq.s32.totalorder %s30, 1
      %p67 = por %p65, %p66
      %p69 = scmp.ne.s32.totalorder %s52, %s68
      %p70 = scmp.eq.s32.totalorder %s30, 0
      %p71 = por %p69, %p70
      %s73 = sadd.s32 %s72, 1
      %p76 = scmp.eq.s32.totalorder %s24, 1
      %p77 = scmp.ne.s32.totalorder %s72, %s74
      %p78 = scmp.eq.s32.totalorder %s24, 0
      %p79 = por %p77, %p78
      %p80 = scmp.ne.s32.totalorder %s72, %s74
      %p81 = scmp.eq.s32.totalorder %s29, 1
      %p82 = por %p80, %p81
      %p83 = scmp.ne.s32.totalorder %s74, %s75
      %p84 = scmp.eq.s32.totalorder %s29, 0
      %p85 = por %p83, %p84
      %p86 = scmp.ne.s32.totalorder %s74, %s75
      %p87 = scmp.eq.s32.totalorder %s30, 1
      %p88 = por %p86, %p87
      %p90 = scmp.ne.s32.totalorder %s75, %s89
      %p91 = scmp.eq.s32.totalorder %s30, 0
      %p92 = por %p90, %p91
      %s94 = sadd.s32 %s93, 1
      %p97 = scmp.eq.s32.totalorder %s24, 1
      %p98 = scmp.ne.s32.totalorder %s93, %s95
      %p99 = scmp.eq.s32.totalorder %s24, 0
      %p100 = por %p98, %p99
      %p101 = scmp.ne.s32.totalorder %s93, %s95
      %p102 = scmp.eq.s32.totalorder %s29, 1
      %p103 = por %p101, %p102
      %p104 = scmp.ne.s32.totalorder %s95, %s96
      %p105 = scmp.eq.s32.totalorder %s29, 0
      %p106 = por %p104, %p105
      %p107 = scmp.ne.s32.totalorder %s95, %s96
      %p108 = scmp.eq.s32.totalorder %s30, 1
      %p109 = por %p107, %p108
      %p111 = scmp.ne.s32.totalorder %s96, %s110
      %p112 = scmp.eq.s32.totalorder %s30, 0
      %p113 = por %p111, %p112
      %s115 = sadd.s32 %s114, 1
      %p118 = scmp.eq.s32.totalorder %s24, 1
      %p119 = scmp.ne.s32.totalorder %s114, %s116
      %p120 = scmp.eq.s32.totalorder %s24, 0
      %p121 = por %p119, %p120
      %p122 = scmp.ne.s32.totalorder %s114, %s116
      %p123 = scmp.eq.s32.totalorder %s29, 1
      %p124 = por %p122, %p123
      %p125 = scmp.ne.s32.totalorder %s116, %s117
      %p126 = scmp.eq.s32.totalorder %s29, 0
      %p127 = por %p125, %p126
      %p128 = scmp.ne.s32.totalorder %s116, %s117
      %p129 = scmp.eq.s32.totalorder %s30, 1
      %p130 = por %p128, %p129
      %p132 = scmp.ne.s32.totalorder %s117, %s131
      %p133 = scmp.eq.s32.totalorder %s30, 0
      %p134 = por %p132, %p133
      %s136 = sadd.s32 %s135, 1
      %p139 = scmp.eq.s32.totalorder %s24, 1
      %p140 = scmp.ne.s32.totalorder %s135, %s137
      %p141 = scmp.eq.s32.totalorder %s24, 0
      %p142 = por %p140, %p141
      %p143 = scmp.ne.s32.totalorder %s135, %s137
      %p144 = scmp.eq.s32.totalorder %s29, 1
      %p145 = por %p143, %p144
      %p146 = scmp.ne.s32.totalorder %s137, %s138
      %p147 = scmp.eq.s32.totalorder %s29, 0
      %p148 = por %p146, %p147
      %p149 = scmp.ne.s32.totalorder %s137, %s138
      %p150 = scmp.eq.s32.totalorder %s30, 1
      %p151 = por %p149, %p150
      %p153 = scmp.ne.s32.totalorder %s138, %s152
      %p154 = scmp.eq.s32.totalorder %s30, 0
      %p155 = por %p153, %p154
      %s157 = sadd.s32 %s156, 1
      %p160 = scmp.eq.s32.totalorder %s24, 1
      %p161 = scmp.ne.s32.totalorder %s156, %s158
      %p162 = scmp.eq.s32.totalorder %s24, 0
      %p163 = por %p161, %p162
      %p164 = scmp.ne.s32.totalorder %s156, %s158
      %p165 = scmp.eq.s32.totalorder %s29, 1
      %p166 = por %p164, %p165
      %p167 = scmp.ne.s32.totalorder %s158, %s159
      %p168 = scmp.eq.s32.totalorder %s29, 0
      %p169 = por %p167, %p168
      %p170 = scmp.ne.s32.totalorder %s158, %s159
      %p171 = scmp.eq.s32.totalorder %s30, 1
      %p172 = por %p170, %p171
      %p174 = scmp.ne.s32.totalorder %s159, %s173
      %p175 = scmp.eq.s32.totalorder %s30, 0
      %p176 = por %p174, %p175
      %s178 = sadd.s32 %s177, 1
      %p181 = scmp.eq.s32.totalorder %s24, 1
      %p182 = scmp.ne.s32.totalorder %s177, %s179
      %p183 = scmp.eq.s32.totalorder %s24, 0
      %p184 = por %p182, %p183
      %p185 = scmp.ne.s32.totalorder %s177, %s179
      %p186 = scmp.eq.s32.totalorder %s29, 1
      %p187 = por %p185, %p186
      %p188 = scmp.ne.s32.totalorder %s179, %s180
      %p189 = scmp.eq.s32.totalorder %s29, 0
      %p190 = por %p188, %p189
      %p191 = scmp.ne.s32.totalorder %s179, %s180
      %p192 = scmp.eq.s32.totalorder %s30, 1
      %p193 = por %p191, %p192
      %p195 = scmp.ne.s32.totalorder %s180, %s194
      %p196 = scmp.eq.s32.totalorder %s30, 0
      %p197 = por %p195, %p196
      %s198 = ssub.s32 %s31, %s43
      %s199 = ssub.s32 %s32, %s39
      %s200 = sor.u32 %s198, %s199
      %p201 = scmp.eq.s32.totalorder %s200, 0
      %s203 = sadd.s32 %s202, 1
      %s204 = scalar_select %p201, %s202, %s203
      %p207 = pneg %p201
      %p208 = scmp.eq.s32.totalorder %s24, 1
      %p209 = por %p207, %p208
      %p210 = scmp.ne.s32.totalorder %s202, %s205
      %p211 = scmp.eq.s32.totalorder %s24, 0
      %p212 = por %p210, %p211
      %p213 = scmp.ne.s32.totalorder %s202, %s205
      %p214 = scmp.eq.s32.totalorder %s29, 1
      %p215 = por %p213, %p214
      %p216 = scmp.ne.s32.totalorder %s205, %s206
      %p217 = scmp.eq.s32.totalorder %s29, 0
      %p218 = por %p216, %p217
      %p219 = scmp.ne.s32.totalorder %s205, %s206
      %p220 = scmp.eq.s32.totalorder %s30, 1
      %p221 = por %p219, %p220
      %p223 = scmp.ne.s32.totalorder %s206, %s222
      %p224 = scmp.eq.s32.totalorder %s30, 0
      %p225 = por %p223, %p224
      %s226 = ssub.s32 %s31, %s43
      %s227 = ssub.s32 %s32, %s39
      %s228 = sor.u32 %s226, %s227
      %p229 = scmp.eq.s32.totalorder %s228, 0
      %s231 = sadd.s32 %s230, 1
      %s232 = scalar_select %p229, %s230, %s231
      %p235 = pneg %p229
      %p236 = scmp.eq.s32.totalorder %s24, 1
      %p237 = por %p235, %p236
      %p238 = scmp.ne.s32.totalorder %s230, %s233
      %p239 = scmp.eq.s32.totalorder %s24, 0
      %p240 = por %p238, %p239
      %p241 = scmp.ne.s32.totalorder %s230, %s233
      %p242 = scmp.eq.s32.totalorder %s29, 1
      %p243 = por %p241, %p242
      %p244 = scmp.ne.s32.totalorder %s233, %s234
      %p245 = scmp.eq.s32.totalorder %s29, 0
      %p246 = por %p244, %p245
      %p247 = scmp.ne.s32.totalorder %s233, %s234
      %p248 = scmp.eq.s32.totalorder %s30, 1
      %p249 = por %p247, %p248
      %p251 = scmp.ne.s32.totalorder %s234, %s250
      %p252 = scmp.eq.s32.totalorder %s30, 0
      %p253 = por %p251, %p252
      %p254 = scmp.le.s32.totalorder 1, %s24
      %p255 = scmp.lt.s32.totalorder %s24, 3
      %p256 = pnand %p254, %p255
      %p257 = pneg %p256
      // Predicated region
      $region9: #{tpu_custom_call.1} parent=5 // pred_check
        _
      $region10: #{tpu_custom_call.1} parent=5 // pred_check_branch
        %259 = sbr.rel (%p256) target = $region12
      $region11: #{tpu_custom_call.1} parent=5 // pred_region
        %s260 = ssub.s32 %s24, 1
        // Predicated region
        $region13: #{tpu_custom_call.1} parent=11 // pred_check
          %p261 = pneg %p85
        $region14: #{tpu_custom_call.1} parent=11 // pred_check_branch
          %263 = sbr.rel (%p261) target = $region16
        $region15: #{tpu_custom_call.1} parent=11 // pred_region
          _
        $region16: #{tpu_custom_call.1} parent=11 // pred_fallthru
          _
        // Predicated region
        $region17: #{tpu_custom_call.1} parent=11 // pred_check
          %p264 = pneg %p106
        $region18: #{tpu_custom_call.1} parent=11 // pred_check_branch
          %266 = sbr.rel (%p264) target = $region20
        $region19: #{tpu_custom_call.1} parent=11 // pred_region
          _
        $region20: #{tpu_custom_call.1} parent=11 // pred_fallthru
          _
        // Predicated region
        $region21: #{tpu_custom_call.1} parent=11 // pred_check
          %p267 = pneg %p127
        $region22: #{tpu_custom_call.1} parent=11 // pred_check_branch
          %269 = sbr.rel (%p267) target = $region24
        $region23: #{tpu_custom_call.1} parent=11 // pred_region
          _
        $region24: #{tpu_custom_call.1} parent=11 // pred_fallthru
          _
        // Predicated region
        $region25: #{tpu_custom_call.1} parent=11 // pred_check
          %p270 = pneg %p148
        $region26: #{tpu_custom_call.1} parent=11 // pred_check_branch
          %272 = sbr.rel (%p270) target = $region28
        $region27: #{tpu_custom_call.1} parent=11 // pred_region
          _
        $region28: #{tpu_custom_call.1} parent=11 // pred_fallthru
          _
        // Predicated region
        $region29: #{tpu_custom_call.1} parent=11 // pred_check
          %p273 = pneg %p169
        $region30: #{tpu_custom_call.1} parent=11 // pred_check_branch
          %275 = sbr.rel (%p273) target = $region32
        $region31: #{tpu_custom_call.1} parent=11 // pred_region
          _
        $region32: #{tpu_custom_call.1} parent=11 // pred_fallthru
          _
        // Predicated region
        $region33: #{tpu_custom_call.1} parent=11 // pred_check
          %p276 = pneg %p190
        $region34: #{tpu_custom_call.1} parent=11 // pred_check_branch
          %278 = sbr.rel (%p276) target = $region36
        $region35: #{tpu_custom_call.1} parent=11 // pred_region
          _
        $region36: #{tpu_custom_call.1} parent=11 // pred_fallthru
          _
      $region12: #{tpu_custom_call.1} parent=5 // pred_fallthru
        _
      %p279 = scmp.lt.s32.totalorder %s24, 2
      // Predicated region
      $region37: #{tpu_custom_call.1} parent=5 // pred_check
        %p280 = pneg %p279
      $region38: #{tpu_custom_call.1} parent=5 // pred_check_branch
        %282 = sbr.rel (%p280) target = $region40
      $region39: #{tpu_custom_call.1} parent=5 // pred_region
        // Predicated region
        $region41: #{tpu_custom_call.1} parent=39 // pred_check
          %p283 = pneg %p58
        $region42: #{tpu_custom_call.1} parent=39 // pred_check_branch
          %285 = sbr.rel (%p283) target = $region44
        $region43: #{tpu_custom_call.1} parent=39 // pred_region
          %s286 = sand.u32 %s48, 1
          %s287 = scalar_lea.sflag [#allocation3], %s286
          %s288 = sand.u32 %s48, 1
          %s289 = smul.addr %s288, 8
          %s290 = scalar_lea.vmem [#allocation2], %s289
          %s291 = smul.u32 2, %s32
          %s293 = ssub.s32 128, 128
          %294 = vsyncadd %s287, %s293
          %s295 = smul.addr %s31, 2
          %s296 = sadd.s32 %s291, %s295
          %s297 = smul.addr %s296, 64
          %s298 = scalar_lea.hbm %s0, %s297
          %s300 = sshll.u32 %s290, 4
          %s301 = int_to_ptr.vmem [resolvable:$true] %s300
          %303 = dma.hbm_to_vmem [thread:$0]  %s298, 128, %s301, %s287
        $region44: #{tpu_custom_call.1} parent=39 // pred_fallthru
          _
      $region40: #{tpu_custom_call.1} parent=5 // pred_fallthru
        _
      %p304 = scmp.le.s32.totalorder 1, %s24
      %p305 = scmp.lt.s32.totalorder %s24, 3
      %p306 = pnand %p304, %p305
      %p307 = pneg %p306
      // Predicated region
      $region45: #{tpu_custom_call.1} parent=5 // pred_check
        _
      $region46: #{tpu_custom_call.1} parent=5 // pred_check_branch
        %309 = sbr.rel (%p306) target = $region48
      $region47: #{tpu_custom_call.1} parent=5 // pred_region
        %s310 = ssub.s32 %s24, 1
        %s311 = sand.u32 %s51, 1
        %s312 = scalar_lea.sflag [#allocation3], %s311
        %s313 = sand.u32 %s51, 1
        %s314 = smul.addr %s313, 8
        %s315 = scalar_lea.vmem [#allocation2], %s314
        // Predicated region
        $region49: #{tpu_custom_call.1} parent=47 // pred_check
          %p316 = pneg %p64
        $region50: #{tpu_custom_call.1} parent=47 // pred_check_branch
          %318 = sbr.rel (%p316) target = $region52
        $region51: #{tpu_custom_call.1} parent=47 // pred_region
          %319 = dma.done %s312, 128
        $region52: #{tpu_custom_call.1} parent=47 // pred_fallthru
          _
        %s320 = sand.u32 %s51, 1
        %s321 = scalar_lea.sflag [#allocation3], %s320
        %s322 = sand.u32 %s51, 1
        %s323 = smul.addr %s322, 8
        %s324 = scalar_lea.vmem [#allocation2], %s323
        %p325 = pneg %p64
        %p326 = pneg %p61
        %p327 = pneg %p85
        %p328 = pneg %p82
        %p329 = pneg %p106
        %p330 = pneg %p103
        %p331 = pneg %p127
        %p332 = pneg %p124
        %p333 = pneg %p148
        %p334 = pneg %p145
        %p335 = pneg %p169
        %p336 = pneg %p166
        %p337 = pneg %p190
        %p338 = pneg %p187
        %p339 = pneg %p218
        %p340 = pneg %p215
        %s341 = sand.u32 %s205, 1
        %s342 = scalar_lea.sflag [#allocation4], %s341
        %s343 = sand.u32 %s205, 1
        %s344 = smul.addr %s343, 4
        %s345 = scalar_lea.vmem [#allocation5], %s344
        %p346 = pneg %p246
        %p347 = pneg %p243
        %s348 = sand.u32 %s233, 1
        %s349 = scalar_lea.sflag [#allocation7], %s348
        %s350 = sand.u32 %s233, 1
        %s351 = smul.addr %s350, 4
        %s352 = scalar_lea.vmem [#allocation6], %s351
        %s353 = smul.u32 2, %s34
        %s354 = smul.u32 2, %s34
        %s355 = smul.u32 2, %s34
        %v357 = vld [vmem:[%s315] sm:$0xff]
        %v359 = vcombine.high %v357, %v357
        %v361 = vpack.c.bf16 %v357, %v357
        %v362 = vpack.c.bf16 %v359, %v359
        %v363 = vld [vmem:[%s1] sm:$0x1]
        %vm364 = vcmask 31744
        %v366 = vsel %vm364, %v363, 0
        %vm368 = vcmask 1041408
        %v370 = vsel %vm368, %v361, 0
        %v373 = vsel %vm368, %v362, 0
        %375 = vmatprep.subr.bf16.mxu0 0
        %376 = vmatpush1.bf16.msra.mxu0 0
        %377 = vmatprep.subr.bf16.mxu0 0
        %378 = vmatpush1.bf16.msra.mxu0 0
        %379 = vmatprep.subr.bf16.mxu0 0
        %380 = vmatpush1.bf16.msra.mxu0 0
        %381 = vmatprep.subr.bf16.mxu0 0
        %382 = vmatpush1.bf16.msra.mxu0 0
        %383 = vmatprep.subr.bf16.mxu0 0
        %384 = vmatpush1.bf16.msra.mxu0 0
        %385 = vmatprep.subr.bf16.mxu0 0
        %386 = vmatpush1.bf16.msra.mxu0 0
        %387 = vmatprep.subr.bf16.mxu0 0
        %388 = vmatpush1.bf16.msra.mxu0 0
        %389 = vmatprep.subr.bf16.mxu0 %v373
        %390 = vmatpush1.bf16.msra.mxu0 %v370
        %391 = vmatprep.subr.bf16.mxu0 0
        %392 = vmatpush2.bf16.msra.mxu0 0
        %393 = vmatprep.subr.bf16.mxu0 0
        %394 = vmatpush2.bf16.msra.mxu0 0
        %395 = vmatprep.subr.bf16.mxu0 0
        %396 = vmatpush2.bf16.msra.mxu0 0
        %397 = vmatprep.subr.bf16.mxu0 0
        %398 = vmatpush2.bf16.msra.mxu0 0
        %399 = vmatprep.subr.bf16.mxu0 0
        %400 = vmatpush2.bf16.msra.mxu0 0
        %401 = vmatprep.subr.bf16.mxu0 0
        %402 = vmatpush2.bf16.msra.mxu0 0
        %403 = vmatprep.subr.bf16.mxu0 0
        %404 = vmatpush2.bf16.msra.mxu0 0
        %405 = vmatprep.subr.bf16.mxu0 0
        %406 = vmatpush2.bf16.msra.mxu0 0
        %407 = vmatprep.mubr.bf16.mxu0 0
        %408 = vmatmul.mubr.bf16.gmra.mxu0 %v366
        %v409 = vpop.f32.mrf.mxu0
        %v410 = vadd.f32 0.0, %v409
        %v411 = vpop.f32.mrf.mxu0
        %v412 = vadd.f32 0.0, %v411
        %v413 = vpop.f32.mrf.mxu0
        %v414 = vpop.f32.mrf.mxu0
        %415 = vdwg.mxu0
        %v416 = vld [vmem:[%s3] sm:$0x3]
        %418 = vset.pattern.permute.xlu0 0
        %419 = vperm.xlu0 %418, %v416
        %v420 = vpop.permute.xlu0 %419
        %v422 = vmul.f32 %v410, %v420
        %v423 = vmul.f32 %v412, %v420
        %v424 = vld [vmem:[%s4] sm:$0x3]
        %426 = vset.pattern.permute.xlu0 0
        %427 = vperm.xlu0 %426, %v424
        %v428 = vpop.permute.xlu0 %427
        %v430 = vadd.f32 %v422, %v428
        %v431 = vadd.f32 %v423, %v428
        %v432 = vxor.u32 %v430, 2147483648
        %v433 = vxor.u32 %v431, 2147483648
        %v434 = vmul.f32 %v432, 1.442695
        %v435 = vpow.pop %v434
        %v436 = vmul.f32 %v433, 1.442695
        %v437 = vpow.pop %v436
        %v438 = vadd.f32 %v435, 1.0
        %v439 = vadd.f32 %v437, 1.0
        %v440 = vrcp.pop %v438
        %v441 = vmul.f32 1.0, %v440
        %v442 = vrcp.pop %v439
        %v443 = vmul.f32 1.0, %v442
        %v444 = vmul.f32 %v430, %v441
        %v445 = vmul.f32 %v431, %v443
        %v448 = vcombine.low %v444, %v445
        %v450 = vunpack.c.l.s4 1983009808
        %v451 = vunpack.c.0.s8 %v450
        %v452 = vlaneseq
        %v453 = vshrl.u32 %v452, 7
        %v454 = vsub.s32 %v451, %v453
        %v455 = vrot.slane %v448, %v454
        %457 = vst [vmem:[%s345] sm:$0xf] %v455
        %v458 = vld [vmem:[%s2] sm:$0x1]
        %v460 = vsel %vm364, %v458, 0
        %462 = vmatprep.subr.bf16.mxu0 0
        %463 = vmatpush1.bf16.msra.mxu0 0
        %464 = vmatprep.subr.bf16.mxu0 0
        %465 = vmatpush1.bf16.msra.mxu0 0
        %466 = vmatprep.subr.bf16.mxu0 0
        %467 = vmatpush1.bf16.msra.mxu0 0
        %468 = vmatprep.subr.bf16.mxu0 0
        %469 = vmatpush1.bf16.msra.mxu0 0
        %470 = vmatprep.subr.bf16.mxu0 0
        %471 = vmatpush1.bf16.msra.mxu0 0
        %472 = vmatprep.subr.bf16.mxu0 0
        %473 = vmatpush1.bf16.msra.mxu0 0
        %474 = vmatprep.subr.bf16.mxu0 0
        %475 = vmatpush1.bf16.msra.mxu0 0
        %476 = vmatprep.subr.bf16.mxu0 %v373
        %477 = vmatpush1.bf16.msra.mxu0 %v370
        %478 = vmatprep.subr.bf16.mxu0 0
        %479 = vmatpush2.bf16.msra.mxu0 0
        %480 = vmatprep.subr.bf16.mxu0 0
        %481 = vmatpush2.bf16.msra.mxu0 0
        %482 = vmatprep.subr.bf16.mxu0 0
        %483 = vmatpush2.bf16.msra.mxu0 0
        %484 = vmatprep.subr.bf16.mxu0 0
        %485 = vmatpush2.bf16.msra.mxu0 0
        %486 = vmatprep.subr.bf16.mxu0 0
        %487 = vmatpush2.bf16.msra.mxu0 0
        %488 = vmatprep.subr.bf16.mxu0 0
        %489 = vmatpush2.bf16.msra.mxu0 0
        %490 = vmatprep.subr.bf16.mxu0 0
        %491 = vmatpush2.bf16.msra.mxu0 0
        %492 = vmatprep.subr.bf16.mxu0 0
        %493 = vmatpush2.bf16.msra.mxu0 0
        %494 = vmatprep.mubr.bf16.mxu0 0
        %495 = vmatmul.mubr.bf16.gmra.mxu0 %v460
        %v496 = vpop.f32.mrf.mxu0
        %v497 = vadd.f32 0.0, %v496
        %v498 = vpop.f32.mrf.mxu0
        %v499 = vadd.f32 0.0, %v498
        %v500 = vpop.f32.mrf.mxu0
        %v501 = vpop.f32.mrf.mxu0
        %502 = vdwg.mxu0
        %v503 = vld [vmem:[%s5] sm:$0x3]
        %505 = vset.pattern.permute.xlu0 0
        %506 = vperm.xlu0 %505, %v503
        %v507 = vpop.permute.xlu0 %506
        %v509 = vmul.f32 %v497, %v507
        %v510 = vmul.f32 %v499, %v507
        %v511 = vld [vmem:[%s6] sm:$0x3]
        %513 = vset.pattern.permute.xlu0 0
        %514 = vperm.xlu0 %513, %v511
        %v515 = vpop.permute.xlu0 %514
        %v517 = vadd.f32 %v509, %v515
        %v518 = vadd.f32 %v510, %v515
        %v519 = vxor.u32 %v517, 2147483648
        %v520 = vxor.u32 %v518, 2147483648
        %v521 = vmul.f32 %v519, 1.442695
        %v522 = vpow.pop %v521
        %v523 = vmul.f32 %v520, 1.442695
        %v524 = vpow.pop %v523
        %v525 = vadd.f32 %v522, 1.0
        %v526 = vadd.f32 %v524, 1.0
        %v527 = vrcp.pop %v525
        %v528 = vmul.f32 1.0, %v527
        %v529 = vrcp.pop %v526
        %v530 = vmul.f32 1.0, %v529
        %v531 = vmul.f32 %v517, %v528
        %v532 = vmul.f32 %v518, %v530
        %v535 = vcombine.low %v531, %v532
        %v537 = vunpack.c.l.s4 1983009808
        %v538 = vunpack.c.0.s8 %v537
        %v539 = vlaneseq
        %v540 = vshrl.u32 %v539, 7
        %v541 = vsub.s32 %v538, %v540
        %v542 = vrot.slane %v535, %v541
        %544 = vst [vmem:[%s352] sm:$0xf] %v542
        %s545 = sand.u32 %s205, 1
        %s546 = scalar_lea.sflag [#allocation4], %s545
        %s547 = sand.u32 %s205, 1
        %s548 = smul.addr %s547, 4
        %s549 = scalar_lea.vmem [#allocation5], %s548
        %s550 = sand.u32 %s233, 1
        %s551 = scalar_lea.sflag [#allocation7], %s550
        %s552 = sand.u32 %s233, 1
        %s553 = smul.addr %s552, 4
        %s554 = scalar_lea.vmem [#allocation6], %s553
        // Predicated region
        $region53: #{tpu_custom_call.1} parent=47 // pred_check
          %p555 = pneg %p215
        $region54: #{tpu_custom_call.1} parent=47 // pred_check_branch
          %557 = sbr.rel (%p555) target = $region56
        $region55: #{tpu_custom_call.1} parent=47 // pred_region
          %s558 = smul.u32 2, %s34
          %s560 = ssub.s32 64, 64
          %561 = vsyncadd %s546, %s560
          %s562 = smul.addr %s33, 2
          %s563 = sadd.s32 %s558, %s562
          %s564 = smul.addr %s563, 32
          %s565 = scalar_lea.hbm %s7, %s564
          %s567 = sshll.u32 %s549, 4
          %s568 = int_to_ptr.vmem [resolvable:$true] %s567
          %570 = dma.vmem_to_hbm [thread:$0]  %s568, 64, %s565, %s546
        $region56: #{tpu_custom_call.1} parent=47 // pred_fallthru
          _
        // Predicated region
        $region57: #{tpu_custom_call.1} parent=47 // pred_check
          %p571 = pneg %p243
        $region58: #{tpu_custom_call.1} parent=47 // pred_check_branch
          %573 = sbr.rel (%p571) target = $region60
        $region59: #{tpu_custom_call.1} parent=47 // pred_region
          %s574 = smul.u32 2, %s34
          %s576 = ssub.s32 64, 64
          %577 = vsyncadd %s551, %s576
          %s578 = smul.addr %s33, 2
          %s579 = sadd.s32 %s574, %s578
          %s580 = smul.addr %s579, 32
          %s581 = scalar_lea.hbm %s8, %s580
          %s583 = sshll.u32 %s554, 4
          %s584 = int_to_ptr.vmem [resolvable:$true] %s583
          %586 = dma.vmem_to_hbm [thread:$0]  %s584, 64, %s581, %s551
        $region60: #{tpu_custom_call.1} parent=47 // pred_fallthru
          _
      $region48: #{tpu_custom_call.1} parent=5 // pred_fallthru
        _
      %p587 = scmp.le.s32.totalorder 2, %s24
      // Predicated region
      $region61: #{tpu_custom_call.1} parent=5 // pred_check
        %p588 = pneg %p587
      $region62: #{tpu_custom_call.1} parent=5 // pred_check_branch
        %590 = sbr.rel (%p588) target = $region64
      $region63: #{tpu_custom_call.1} parent=5 // pred_region
        %s591 = ssub.s32 %s24, 2
        // Predicated region
        $region65: #{tpu_custom_call.1} parent=63 // pred_check
          %p592 = pneg %p221
        $region66: #{tpu_custom_call.1} parent=63 // pred_check_branch
          %594 = sbr.rel (%p592) target = $region68
        $region67: #{tpu_custom_call.1} parent=63 // pred_region
          %s595 = sand.u32 %s206, 1
          %s596 = scalar_lea.sflag [#allocation4], %s595
          %s597 = sand.u32 %s206, 1
          %s598 = smul.addr %s597, 4
          %s599 = scalar_lea.vmem [#allocation5], %s598
          %600 = dma.done %s596, 64
        $region68: #{tpu_custom_call.1} parent=63 // pred_fallthru
          _
        // Predicated region
        $region69: #{tpu_custom_call.1} parent=63 // pred_check
          %p601 = pneg %p249
        $region70: #{tpu_custom_call.1} parent=63 // pred_check_branch
          %603 = sbr.rel (%p601) target = $region72
        $region71: #{tpu_custom_call.1} parent=63 // pred_region
          %s604 = sand.u32 %s234, 1
          %s605 = scalar_lea.sflag [#allocation7], %s604
          %s606 = sand.u32 %s234, 1
          %s607 = smul.addr %s606, 4
          %s608 = scalar_lea.vmem [#allocation6], %s607
          %609 = dma.done %s605, 64
        $region72: #{tpu_custom_call.1} parent=63 // pred_fallthru
          _
      $region64: #{tpu_custom_call.1} parent=5 // pred_fallthru
        _
    $region6: #{tpu_custom_call.1} parent=1 // loop_footer
      %s28 = sadd.s32 1, %s24
    $region7: #{tpu_custom_call.1} parent=1 // loop_footer_branch
      %23 = sbr.rel target = $region3
    $region8: #{tpu_custom_call.1} parent=1 // loop_exit
      _
    %610 = vsyncpa [#allocation3], 1
    %s611 = scalar_lea.sflag [#allocation3], 1
    %612 = vsyncpa %s611, 1
    %613 = vsyncpa [#allocation4], 1
    %s614 = scalar_lea.sflag [#allocation4], 1
    %615 = vsyncpa %s614, 1
    %616 = vsyncpa [#allocation7], 1
    %s617 = scalar_lea.sflag [#allocation7], 1
    %618 = vsyncpa %s617, 1

</llo_original>
